<compile_context>
chip_gen: v7x
topology: tpu7x:2x2x1
jax: 0.10.0
libtpu: 0.0.40
codegen_flags: <defaults>
</compile_context>

<pallas_src>
import jax
import jax.numpy as jnp
from jax.experimental import pallas as pl
from jax.experimental.pallas import tpu as pltpu

EPS = 1e-5


def mlp_kernel(x_ref,
               w1_ref, p1_ref,
               w2_ref, p2_ref,
               w3_ref, b3_ref,
               o_ref):
    # x_ref block: (B, F_in)  -- leading instance dim squeezed by BlockSpec
    x = x_ref[...]
    inv_b = 1.0 / float(x.shape[0])

    def fc_bn_relu(h_in, w_ref, p_ref):
        p = p_ref[...]                       # (3, H): rows = bias, gamma, beta
        bias = p[0:1, :]
        gamma = p[1:2, :]
        beta = p[2:3, :]

        h = jnp.dot(h_in, w_ref[...], preferred_element_type=jnp.float32) + bias

        # fused single-pass batch statistics (biased variance, training mode)
        s1 = jnp.sum(h, axis=0, keepdims=True)
        s2 = jnp.sum(h * h, axis=0, keepdims=True)
        mean = s1 * inv_b
        var = jnp.maximum(s2 * inv_b - mean * mean, 0.0)

        h = (h - mean) * jax.lax.rsqrt(var + EPS)
        h = h * gamma + beta
        return jnp.maximum(h, 0.0)

    h = fc_bn_relu(x, w1_ref, p1_ref)        # fc1 -> bn1 -> relu
    h = fc_bn_relu(h, w2_ref, p2_ref)        # fc2 -> bn2 -> relu

    out = jnp.dot(h, w3_ref[...], preferred_element_type=jnp.float32) + b3_ref[...]
    out = jax.nn.sigmoid(out)                # out_fun == 'sigmoid'

    o_ref[...] = out.astype(o_ref.dtype)


def generative_model_forward(x, params):
    """x: (num_batches, batch, input_size). One grid step per independent batch."""
    w1, p1, w2, p2, w3, b3 = params
    N, B, F_in = x.shape
    F_out = w3.shape[1]

    def resident(arr):
        # full-array block, constant index_map -> stays VMEM-resident across grid
        return pl.BlockSpec(arr.shape, lambda i: (0,) * arr.ndim)

    return pl.pallas_call(
        mlp_kernel,
        out_shape=jax.ShapeDtypeStruct((N, B, F_out), jnp.float32),
        grid=(N,),
        in_specs=[
            pl.BlockSpec((None, B, F_in), lambda i: (i, 0, 0)),   # x (instance i)
            resident(w1), resident(p1),
            resident(w2), resident(p2),
            resident(w3), resident(b3),
        ],
        out_specs=pl.BlockSpec((None, B, F_out), lambda i: (i, 0, 0)),
        compiler_params=pltpu.CompilerParams(
            dimension_semantics=("parallel",)),                   # v7x: 2 TCs
    )(x, w1, p1, w2, p2, w3, b3)


def init_params(key, input_size, h1, h2, output_size):
    """PyTorch-Linear-style init; BN affine params randomized to exercise that path."""
    def linear(k, fan_in, fan_out):
        kw, kb = jax.random.split(k)
        bound = 1.0 / (fan_in ** 0.5)
        w = jax.random.uniform(kw, (fan_in, fan_out), jnp.float32, -bound, bound)
        b = jax.random.uniform(kb, (1, fan_out), jnp.float32, -bound, bound)
        return w, b

    k1, k2, k3, k4, k5 = jax.random.split(key, 5)
    w1, b1 = linear(k1, input_size, h1)
    w2, b2 = linear(k2, h1, h2)
    w3, b3 = linear(k3, h2, output_size)

    g1 = 1.0 + 0.1 * jax.random.normal(k4, (1, h1), jnp.float32)
    be1 = 0.1 * jax.random.normal(k4, (1, h1), jnp.float32)
    g2 = 1.0 + 0.1 * jax.random.normal(k5, (1, h2), jnp.float32)
    be2 = 0.1 * jax.random.normal(k5, (1, h2), jnp.float32)

    p1 = jnp.concatenate([b1, g1, be1], axis=0)   # (3, h1): bias, gamma, beta
    p2 = jnp.concatenate([b2, g2, be2], axis=0)   # (3, h2)
    return (w1, p1, w2, p2, w3, b3)


def reference_forward(x, params):
    """Pure-JAX reference: module forward applied independently per batch."""
    w1, p1, w2, p2, w3, b3 = params

    def bn_relu(h, p):
        g, be = p[1:2, :], p[2:3, :]
        m = jnp.mean(h, axis=0, keepdims=True)
        v = jnp.mean((h - m) ** 2, axis=0, keepdims=True)
        return jnp.maximum((h - m) / jnp.sqrt(v + EPS) * g + be, 0.0)

    def single(xb):
        h = bn_relu(xb @ w1 + p1[0:1, :], p1)
        h = bn_relu(h @ w2 + p2[0:1, :], p2)
        return jax.nn.sigmoid(h @ w3 + b3)

    return jax.vmap(single)(x)


if __name__ == "__main__":
    # small shapes consistent with the module's MLP structure
    num_batches, batch, input_size, hidden1, hidden2, output_size = 4, 32, 16, 32, 32, 16

    key = jax.random.PRNGKey(0)
    kx, kp = jax.random.split(key)
    x = jax.random.normal(kx, (num_batches, batch, input_size), jnp.float32)
    params = init_params(kp, input_size, hidden1, hidden2, output_size)

    out = generative_model_forward(x, params)
    out = jax.block_until_ready(out)

    ref = reference_forward(x, params)
    assert out.shape == (num_batches, batch, output_size)
    assert jnp.allclose(out, ref, atol=1e-4, rtol=1e-4)

    print("KERNEL_OK")
</pallas_src>

<mosaic_0001>
module attributes {stable_mosaic.version = 11 : i64} {
  func.func @mlp_kernel(%arg0: i32, %arg1: memref<1x32x16xf32, #tpu.memory_space<vmem>>, %arg2: memref<16x32xf32, #tpu.memory_space<vmem>>, %arg3: memref<3x32xf32, #tpu.memory_space<vmem>>, %arg4: memref<32x32xf32, #tpu.memory_space<vmem>>, %arg5: memref<3x32xf32, #tpu.memory_space<vmem>>, %arg6: memref<32x16xf32, #tpu.memory_space<vmem>>, %arg7: memref<1x16xf32, #tpu.memory_space<vmem>>, %arg8: memref<1x32x16xf32, #tpu.memory_space<vmem>>) attributes {dimension_semantics = [#tpu.dimension_semantics<parallel>], iteration_bounds = array<i64: 4>, scalar_prefetch = 0 : i64, scratch_operands = 0 : i64, tpu.core_type = #tpu.core_type<tc>, window_params = [{transform_indices = @transform_0, window_bounds = array<i64: 1, 32, 16>}, {pipeline_mode = #tpu.pipeline_mode<synchronous>, transform_indices = @transform_1, window_bounds = array<i64: 16, 32>}, {pipeline_mode = #tpu.pipeline_mode<synchronous>, transform_indices = @transform_2, window_bounds = array<i64: 3, 32>}, {pipeline_mode = #tpu.pipeline_mode<synchronous>, transform_indices = @transform_3, window_bounds = array<i64: 32, 32>}, {pipeline_mode = #tpu.pipeline_mode<synchronous>, transform_indices = @transform_4, window_bounds = array<i64: 3, 32>}, {pipeline_mode = #tpu.pipeline_mode<synchronous>, transform_indices = @transform_5, window_bounds = array<i64: 32, 16>}, {pipeline_mode = #tpu.pipeline_mode<synchronous>, transform_indices = @transform_6, window_bounds = array<i64: 1, 16>}, {transform_indices = @transform_7, window_bounds = array<i64: 1, 32, 16>}]} {
    %c0 = arith.constant 0 : index
    %c0_0 = arith.constant 0 : index
    %c0_1 = arith.constant 0 : index
    %0 = vector.load %arg1[%c0, %c0_0, %c0_1] : memref<1x32x16xf32, #tpu.memory_space<vmem>>, vector<1x32x16xf32>
    %1 = vector.shape_cast %0 : vector<1x32x16xf32> to vector<32x16xf32>
    %c0_2 = arith.constant 0 : index
    %c0_3 = arith.constant 0 : index
    %2 = vector.load %arg3[%c0_2, %c0_3] : memref<3x32xf32, #tpu.memory_space<vmem>>, vector<3x32xf32>
    %3 = vector.extract_strided_slice %2 {offsets = [0, 0], sizes = [1, 32], strides = [1, 1]} : vector<3x32xf32> to vector<1x32xf32>
    %4 = vector.extract_strided_slice %2 {offsets = [1, 0], sizes = [1, 32], strides = [1, 1]} : vector<3x32xf32> to vector<1x32xf32>
    %5 = vector.extract_strided_slice %2 {offsets = [2, 0], sizes = [1, 32], strides = [1, 1]} : vector<3x32xf32> to vector<1x32xf32>
    %c0_4 = arith.constant 0 : index
    %c0_5 = arith.constant 0 : index
    %6 = vector.load %arg2[%c0_4, %c0_5] : memref<16x32xf32, #tpu.memory_space<vmem>>, vector<16x32xf32>
    %cst = arith.constant dense<0.000000e+00> : vector<32x32xf32>
    %7 = tpu.matmul %1, %6, %cst {dimension_numbers = #tpu.dot_dimension_numbers<[1], [0], [0], [1], [0, 0, 1, 1], [], []>} : vector<32x16xf32>, vector<16x32xf32>, vector<32x32xf32> -> vector<32x32xf32>
    %8 = vector.broadcast %3 : vector<1x32xf32> to vector<32x32xf32>
    %9 = arith.addf %7, %8 : vector<32x32xf32>
    %cst_6 = arith.constant dense<0.000000e+00> : vector<32xf32>
    %10 = vector.multi_reduction <add>, %9, %cst_6 [0] : vector<32x32xf32> to vector<32xf32>
    %11 = vector.shape_cast %10 : vector<32xf32> to vector<1x32xf32>
    %12 = arith.mulf %9, %9 : vector<32x32xf32>
    %cst_7 = arith.constant dense<0.000000e+00> : vector<32xf32>
    %13 = vector.multi_reduction <add>, %12, %cst_7 [0] : vector<32x32xf32> to vector<32xf32>
    %14 = vector.shape_cast %13 : vector<32xf32> to vector<1x32xf32>
    %cst_8 = arith.constant 3.125000e-02 : f32
    %15 = vector.broadcast %cst_8 : f32 to vector<1x32xf32>
    %16 = arith.mulf %11, %15 : vector<1x32xf32>
    %cst_9 = arith.constant 3.125000e-02 : f32
    %17 = vector.broadcast %cst_9 : f32 to vector<1x32xf32>
    %18 = arith.mulf %14, %17 : vector<1x32xf32>
    %19 = arith.mulf %16, %16 : vector<1x32xf32>
    %20 = arith.subf %18, %19 : vector<1x32xf32>
    %cst_10 = arith.constant 0.000000e+00 : f32
    %21 = vector.broadcast %cst_10 : f32 to vector<1x32xf32>
    %22 = arith.maximumf %20, %21 : vector<1x32xf32>
    %23 = vector.broadcast %16 : vector<1x32xf32> to vector<32x32xf32>
    %24 = arith.subf %9, %23 : vector<32x32xf32>
    %cst_11 = arith.constant 9.99999974E-6 : f32
    %25 = vector.broadcast %cst_11 : f32 to vector<1x32xf32>
    %26 = arith.addf %22, %25 : vector<1x32xf32>
    %27 = math.rsqrt %26 : vector<1x32xf32>
    %28 = vector.broadcast %27 : vector<1x32xf32> to vector<32x32xf32>
    %29 = arith.mulf %24, %28 : vector<32x32xf32>
    %30 = vector.broadcast %4 : vector<1x32xf32> to vector<32x32xf32>
    %31 = arith.mulf %29, %30 : vector<32x32xf32>
    %32 = vector.broadcast %5 : vector<1x32xf32> to vector<32x32xf32>
    %33 = arith.addf %31, %32 : vector<32x32xf32>
    %cst_12 = arith.constant 0.000000e+00 : f32
    %34 = vector.broadcast %cst_12 : f32 to vector<32x32xf32>
    %35 = arith.maximumf %33, %34 : vector<32x32xf32>
    %c0_13 = arith.constant 0 : index
    %c0_14 = arith.constant 0 : index
    %36 = vector.load %arg5[%c0_13, %c0_14] : memref<3x32xf32, #tpu.memory_space<vmem>>, vector<3x32xf32>
    %37 = vector.extract_strided_slice %36 {offsets = [0, 0], sizes = [1, 32], strides = [1, 1]} : vector<3x32xf32> to vector<1x32xf32>
    %38 = vector.extract_strided_slice %36 {offsets = [1, 0], sizes = [1, 32], strides = [1, 1]} : vector<3x32xf32> to vector<1x32xf32>
    %39 = vector.extract_strided_slice %36 {offsets = [2, 0], sizes = [1, 32], strides = [1, 1]} : vector<3x32xf32> to vector<1x32xf32>
    %c0_15 = arith.constant 0 : index
    %c0_16 = arith.constant 0 : index
    %40 = vector.load %arg4[%c0_15, %c0_16] : memref<32x32xf32, #tpu.memory_space<vmem>>, vector<32x32xf32>
    %cst_17 = arith.constant dense<0.000000e+00> : vector<32x32xf32>
    %41 = tpu.matmul %35, %40, %cst_17 {dimension_numbers = #tpu.dot_dimension_numbers<[1], [0], [0], [1], [0, 0, 1, 1], [], []>} : vector<32x32xf32>, vector<32x32xf32>, vector<32x32xf32> -> vector<32x32xf32>
    %42 = vector.broadcast %37 : vector<1x32xf32> to vector<32x32xf32>
    %43 = arith.addf %41, %42 : vector<32x32xf32>
    %cst_18 = arith.constant dense<0.000000e+00> : vector<32xf32>
    %44 = vector.multi_reduction <add>, %43, %cst_18 [0] : vector<32x32xf32> to vector<32xf32>
    %45 = vector.shape_cast %44 : vector<32xf32> to vector<1x32xf32>
    %46 = arith.mulf %43, %43 : vector<32x32xf32>
    %cst_19 = arith.constant dense<0.000000e+00> : vector<32xf32>
    %47 = vector.multi_reduction <add>, %46, %cst_19 [0] : vector<32x32xf32> to vector<32xf32>
    %48 = vector.shape_cast %47 : vector<32xf32> to vector<1x32xf32>
    %cst_20 = arith.constant 3.125000e-02 : f32
    %49 = vector.broadcast %cst_20 : f32 to vector<1x32xf32>
    %50 = arith.mulf %45, %49 : vector<1x32xf32>
    %cst_21 = arith.constant 3.125000e-02 : f32
    %51 = vector.broadcast %cst_21 : f32 to vector<1x32xf32>
    %52 = arith.mulf %48, %51 : vector<1x32xf32>
    %53 = arith.mulf %50, %50 : vector<1x32xf32>
    %54 = arith.subf %52, %53 : vector<1x32xf32>
    %cst_22 = arith.constant 0.000000e+00 : f32
    %55 = vector.broadcast %cst_22 : f32 to vector<1x32xf32>
    %56 = arith.maximumf %54, %55 : vector<1x32xf32>
    %57 = vector.broadcast %50 : vector<1x32xf32> to vector<32x32xf32>
    %58 = arith.subf %43, %57 : vector<32x32xf32>
    %cst_23 = arith.constant 9.99999974E-6 : f32
    %59 = vector.broadcast %cst_23 : f32 to vector<1x32xf32>
    %60 = arith.addf %56, %59 : vector<1x32xf32>
    %61 = math.rsqrt %60 : vector<1x32xf32>
    %62 = vector.broadcast %61 : vector<1x32xf32> to vector<32x32xf32>
    %63 = arith.mulf %58, %62 : vector<32x32xf32>
    %64 = vector.broadcast %38 : vector<1x32xf32> to vector<32x32xf32>
    %65 = arith.mulf %63, %64 : vector<32x32xf32>
    %66 = vector.broadcast %39 : vector<1x32xf32> to vector<32x32xf32>
    %67 = arith.addf %65, %66 : vector<32x32xf32>
    %cst_24 = arith.constant 0.000000e+00 : f32
    %68 = vector.broadcast %cst_24 : f32 to vector<32x32xf32>
    %69 = arith.maximumf %67, %68 : vector<32x32xf32>
    %c0_25 = arith.constant 0 : index
    %c0_26 = arith.constant 0 : index
    %70 = vector.load %arg6[%c0_25, %c0_26] : memref<32x16xf32, #tpu.memory_space<vmem>>, vector<32x16xf32>
    %cst_27 = arith.constant dense<0.000000e+00> : vector<32x16xf32>
    %71 = tpu.matmul %69, %70, %cst_27 {dimension_numbers = #tpu.dot_dimension_numbers<[1], [0], [0], [1], [0, 0, 1, 1], [], []>} : vector<32x32xf32>, vector<32x16xf32>, vector<32x16xf32> -> vector<32x16xf32>
    %c0_28 = arith.constant 0 : index
    %c0_29 = arith.constant 0 : index
    %72 = vector.load %arg7[%c0_28, %c0_29] : memref<1x16xf32, #tpu.memory_space<vmem>>, vector<1x16xf32>
    %73 = vector.broadcast %72 : vector<1x16xf32> to vector<32x16xf32>
    %74 = arith.addf %71, %73 : vector<32x16xf32>
    %75 = arith.negf %74 : vector<32x16xf32>
    %76 = math.exp %75 : vector<32x16xf32>
    %cst_30 = arith.constant 1.000000e+00 : f32
    %77 = vector.broadcast %cst_30 : f32 to vector<32x16xf32>
    %78 = arith.addf %77, %76 : vector<32x16xf32>
    %79 = arith.divf %77, %78 : vector<32x16xf32>
    %c0_31 = arith.constant 0 : index
    %c0_32 = arith.constant 0 : index
    %c0_33 = arith.constant 0 : index
    %80 = vector.load %arg8[%c0_31, %c0_32, %c0_33] : memref<1x32x16xf32, #tpu.memory_space<vmem>>, vector<1x32x16xf32>
    %81 = vector.shape_cast %80 : vector<1x32x16xf32> to vector<32x16xf32>
    %82 = vector.shape_cast %79 : vector<32x16xf32> to vector<1x32x16xf32>
    tpu.vector_store %arg8[%c0_31, %c0_32, %c0_33], %82 {strides = array<i32>} : memref<1x32x16xf32, #tpu.memory_space<vmem>>, vector<1x32x16xf32>,
    return
  }
  func.func @transform_0(%arg0: i32) -> (i32, i32, i32) {
    %c0_i32 = arith.constant 0 : i32
    %c0_i32_0 = arith.constant 0 : i32
    %c0_i32_1 = arith.constant 0 : i32
    return %arg0, %c0_i32, %c0_i32_0 : i32, i32, i32
  }
  func.func @transform_1(%arg0: i32) -> (i32, i32) {
    %c0_i32 = arith.constant 0 : i32
    %c0_i32_0 = arith.constant 0 : i32
    %c0_i32_1 = arith.constant 0 : i32
    return %c0_i32, %c0_i32_0 : i32, i32
  }
  func.func @transform_2(%arg0: i32) -> (i32, i32) {
    %c0_i32 = arith.constant 0 : i32
    %c0_i32_0 = arith.constant 0 : i32
    %c0_i32_1 = arith.constant 0 : i32
    return %c0_i32, %c0_i32_0 : i32, i32
  }
  func.func @transform_3(%arg0: i32) -> (i32, i32) {
    %c0_i32 = arith.constant 0 : i32
    %c0_i32_0 = arith.constant 0 : i32
    %c0_i32_1 = arith.constant 0 : i32
    return %c0_i32, %c0_i32_0 : i32, i32
  }
  func.func @transform_4(%arg0: i32) -> (i32, i32) {
    %c0_i32 = arith.constant 0 : i32
    %c0_i32_0 = arith.constant 0 : i32
    %c0_i32_1 = arith.constant 0 : i32
    return %c0_i32, %c0_i32_0 : i32, i32
  }
  func.func @transform_5(%arg0: i32) -> (i32, i32) {
    %c0_i32 = arith.constant 0 : i32
    %c0_i32_0 = arith.constant 0 : i32
    %c0_i32_1 = arith.constant 0 : i32
    return %c0_i32, %c0_i32_0 : i32, i32
  }
  func.func @transform_6(%arg0: i32) -> (i32, i32) {
    %c0_i32 = arith.constant 0 : i32
    %c0_i32_0 = arith.constant 0 : i32
    %c0_i32_1 = arith.constant 0 : i32
    return %c0_i32, %c0_i32_0 : i32, i32
  }
  func.func @transform_7(%arg0: i32) -> (i32, i32, i32) {
    %c0_i32 = arith.constant 0 : i32
    %c0_i32_0 = arith.constant 0 : i32
    %c0_i32_1 = arith.constant 0 : i32
    return %arg0, %c0_i32, %c0_i32_0 : i32, i32, i32
  }
}

</mosaic_0001>

<llo_original>
// kernel: tpu_custom_call.1
$region0: #{tpu_custom_call.1}
  #allocation0 [shape = 'u32[]', space=smem, size = 0x4, offset = 0x4, fixed_abs, tag = 'smem constant byte address 0x4 - core index']
  #allocation1 [shape = 'u32[144,128]{1,0:T(1,128)}', space=vmem, size = 0x12000, scoped, tag = 'internal scratch']
  %s0 = inlined_call_operand.vmem [shape: f32[4,32,16], index: 0, kind: input, shape index: {}]
  %s1 = inlined_call_operand.vmem [shape: f32[16,32], index: 1, kind: input, shape index: {}]
  %s2 = inlined_call_operand.vmem [shape: f32[3,32], index: 2, kind: input, shape index: {}]
  %s3 = inlined_call_operand.vmem [shape: f32[32,32], index: 3, kind: input, shape index: {}]
  %s4 = inlined_call_operand.vmem [shape: f32[3,32], index: 4, kind: input, shape index: {}]
  %s5 = inlined_call_operand.vmem [shape: f32[32,16], index: 5, kind: input, shape index: {}]
  %s6 = inlined_call_operand.vmem [shape: f32[1,16], index: 6, kind: input, shape index: {}]
  %s7 = inlined_call_operand.vmem [shape: f32[4,32,16], index: 7, kind: output, shape index: {}]
  %s8 = sld [smem:[#allocation0]]
  $region61: #{tpu_custom_call.1} parent=0
    _
  %s10 = ssub.s32 1, %s8
  %s11 = scalar_select 0, %s10, %s8
  loop: start=0, step=1, limit=6
  $region2: #{tpu_custom_call.1} parent=0 // loop_pre_header
    _
  $region3: #{tpu_custom_call.1} parent=0 // loop_header
    %s13 = sphi 0, %s17
    %p14 = scmp.ge.s32.totalorder %s13, 6
    %s23 = sphi 0, %s25
    %s26 = sphi 0, %s23
    %s27 = sphi 0, %s26
    %s43 = sphi 0, %s27
    %s47 = sphi 0, %s47
    %s49 = sphi 0, %s47
    %s50 = sphi 0, %s49
    %s64 = sphi 0, %s50
    %s68 = sphi 0, %s68
    %s70 = sphi 0, %s68
    %s71 = sphi 0, %s70
    %s85 = sphi 0, %s71
    %s89 = sphi 0, %s89
    %s91 = sphi 0, %s89
    %s92 = sphi 0, %s91
    %s106 = sphi 0, %s92
    %s110 = sphi 0, %s110
    %s112 = sphi 0, %s110
    %s113 = sphi 0, %s112
    %s127 = sphi 0, %s113
    %s131 = sphi 0, %s131
    %s133 = sphi 0, %s131
    %s134 = sphi 0, %s133
    %s148 = sphi 0, %s134
    %s152 = sphi 0, %s152
    %s154 = sphi 0, %s152
    %s155 = sphi 0, %s154
    %s169 = sphi 0, %s155
    %s175 = sphi 0, %s177
    %s178 = sphi 0, %s175
    %s179 = sphi 0, %s178
    %s195 = sphi 0, %s179
  $region4: #{tpu_custom_call.1} parent=0 // loop_header_branch
    %16 = sbr.rel (%p14) target = $region8
  $region5: #{tpu_custom_call.1} parent=0 // loop_body
    %s18 = ssub.s32 %s13, 1
    %s19 = ssub.s32 %s13, 2
    %s20 = sadd.s32 %s13, 1
    %s21 = ssub.s32 %s13, %s20
    %p22 = scmp.eq.s32.totalorder %s21, 0
    %s24 = sadd.s32 %s23, 1
    %s25 = scalar_select %p22, %s23, %s24
    %p28 = pneg %p22
    %p29 = scmp.eq.s32.totalorder %s13, 3
    %p30 = por %p28, %p29
    %p31 = scmp.ne.s32.totalorder %s23, %s26
    %p32 = scmp.eq.s32.totalorder %s13, 0
    %p33 = por %p31, %p32
    %p34 = scmp.ne.s32.totalorder %s23, %s26
    %p35 = scmp.eq.s32.totalorder %s18, 3
    %p36 = por %p34, %p35
    %p37 = scmp.ne.s32.totalorder %s26, %s27
    %p38 = scmp.eq.s32.totalorder %s18, 0
    %p39 = por %p37, %p38
    %p40 = scmp.ne.s32.totalorder %s26, %s27
    %p41 = scmp.eq.s32.totalorder %s19, 3
    %p42 = por %p40, %p41
    %p44 = scmp.ne.s32.totalorder %s27, %s43
    %p45 = scmp.eq.s32.totalorder %s19, 0
    %p46 = por %p44, %p45
    %s48 = sadd.s32 %s47, 1
    %p51 = scmp.eq.s32.totalorder %s13, 3
    %p52 = scmp.ne.s32.totalorder %s47, %s49
    %p53 = scmp.eq.s32.totalorder %s13, 0
    %p54 = por %p52, %p53
    %p55 = scmp.ne.s32.totalorder %s47, %s49
    %p56 = scmp.eq.s32.totalorder %s18, 3
    %p57 = por %p55, %p56
    %p58 = scmp.ne.s32.totalorder %s49, %s50
    %p59 = scmp.eq.s32.totalorder %s18, 0
    %p60 = por %p58, %p59
    %p61 = scmp.ne.s32.totalorder %s49, %s50
    %p62 = scmp.eq.s32.totalorder %s19, 3
    %p63 = por %p61, %p62
    %p65 = scmp.ne.s32.totalorder %s50, %s64
    %p66 = scmp.eq.s32.totalorder %s19, 0
    %p67 = por %p65, %p66
    %s69 = sadd.s32 %s68, 1
    %p72 = scmp.eq.s32.totalorder %s13, 3
    %p73 = scmp.ne.s32.totalorder %s68, %s70
    %p74 = scmp.eq.s32.totalorder %s13, 0
    %p75 = por %p73, %p74
    %p76 = scmp.ne.s32.totalorder %s68, %s70
    %p77 = scmp.eq.s32.totalorder %s18, 3
    %p78 = por %p76, %p77
    %p79 = scmp.ne.s32.totalorder %s70, %s71
    %p80 = scmp.eq.s32.totalorder %s18, 0
    %p81 = por %p79, %p80
    %p82 = scmp.ne.s32.totalorder %s70, %s71
    %p83 = scmp.eq.s32.totalorder %s19, 3
    %p84 = por %p82, %p83
    %p86 = scmp.ne.s32.totalorder %s71, %s85
    %p87 = scmp.eq.s32.totalorder %s19, 0
    %p88 = por %p86, %p87
    %s90 = sadd.s32 %s89, 1
    %p93 = scmp.eq.s32.totalorder %s13, 3
    %p94 = scmp.ne.s32.totalorder %s89, %s91
    %p95 = scmp.eq.s32.totalorder %s13, 0
    %p96 = por %p94, %p95
    %p97 = scmp.ne.s32.totalorder %s89, %s91
    %p98 = scmp.eq.s32.totalorder %s18, 3
    %p99 = por %p97, %p98
    %p100 = scmp.ne.s32.totalorder %s91, %s92
    %p101 = scmp.eq.s32.totalorder %s18, 0
    %p102 = por %p100, %p101
    %p103 = scmp.ne.s32.totalorder %s91, %s92
    %p104 = scmp.eq.s32.totalorder %s19, 3
    %p105 = por %p103, %p104
    %p107 = scmp.ne.s32.totalorder %s92, %s106
    %p108 = scmp.eq.s32.totalorder %s19, 0
    %p109 = por %p107, %p108
    %s111 = sadd.s32 %s110, 1
    %p114 = scmp.eq.s32.totalorder %s13, 3
    %p115 = scmp.ne.s32.totalorder %s110, %s112
    %p116 = scmp.eq.s32.totalorder %s13, 0
    %p117 = por %p115, %p116
    %p118 = scmp.ne.s32.totalorder %s110, %s112
    %p119 = scmp.eq.s32.totalorder %s18, 3
    %p120 = por %p118, %p119
    %p121 = scmp.ne.s32.totalorder %s112, %s113
    %p122 = scmp.eq.s32.totalorder %s18, 0
    %p123 = por %p121, %p122
    %p124 = scmp.ne.s32.totalorder %s112, %s113
    %p125 = scmp.eq.s32.totalorder %s19, 3
    %p126 = por %p124, %p125
    %p128 = scmp.ne.s32.totalorder %s113, %s127
    %p129 = scmp.eq.s32.totalorder %s19, 0
    %p130 = por %p128, %p129
    %s132 = sadd.s32 %s131, 1
    %p135 = scmp.eq.s32.totalorder %s13, 3
    %p136 = scmp.ne.s32.totalorder %s131, %s133
    %p137 = scmp.eq.s32.totalorder %s13, 0
    %p138 = por %p136, %p137
    %p139 = scmp.ne.s32.totalorder %s131, %s133
    %p140 = scmp.eq.s32.totalorder %s18, 3
    %p141 = por %p139, %p140
    %p142 = scmp.ne.s32.totalorder %s133, %s134
    %p143 = scmp.eq.s32.totalorder %s18, 0
    %p144 = por %p142, %p143
    %p145 = scmp.ne.s32.totalorder %s133, %s134
    %p146 = scmp.eq.s32.totalorder %s19, 3
    %p147 = por %p145, %p146
    %p149 = scmp.ne.s32.totalorder %s134, %s148
    %p150 = scmp.eq.s32.totalorder %s19, 0
    %p151 = por %p149, %p150
    %s153 = sadd.s32 %s152, 1
    %p156 = scmp.eq.s32.totalorder %s13, 3
    %p157 = scmp.ne.s32.totalorder %s152, %s154
    %p158 = scmp.eq.s32.totalorder %s13, 0
    %p159 = por %p157, %p158
    %p160 = scmp.ne.s32.totalorder %s152, %s154
    %p161 = scmp.eq.s32.totalorder %s18, 3
    %p162 = por %p160, %p161
    %p163 = scmp.ne.s32.totalorder %s154, %s155
    %p164 = scmp.eq.s32.totalorder %s18, 0
    %p165 = por %p163, %p164
    %p166 = scmp.ne.s32.totalorder %s154, %s155
    %p167 = scmp.eq.s32.totalorder %s19, 3
    %p168 = por %p166, %p167
    %p170 = scmp.ne.s32.totalorder %s155, %s169
    %p171 = scmp.eq.s32.totalorder %s19, 0
    %p172 = por %p170, %p171
    %s173 = ssub.s32 %s13, %s20
    %p174 = scmp.eq.s32.totalorder %s173, 0
    %s176 = sadd.s32 %s175, 1
    %s177 = scalar_select %p174, %s175, %s176
    %p180 = pneg %p174
    %p181 = scmp.eq.s32.totalorder %s13, 3
    %p182 = por %p180, %p181
    %p183 = scmp.ne.s32.totalorder %s175, %s178
    %p184 = scmp.eq.s32.totalorder %s13, 0
    %p185 = por %p183, %p184
    %p186 = scmp.ne.s32.totalorder %s175, %s178
    %p187 = scmp.eq.s32.totalorder %s18, 3
    %p188 = por %p186, %p187
    %p189 = scmp.ne.s32.totalorder %s178, %s179
    %p190 = scmp.eq.s32.totalorder %s18, 0
    %p191 = por %p189, %p190
    %p192 = scmp.ne.s32.totalorder %s178, %s179
    %p193 = scmp.eq.s32.totalorder %s19, 3
    %p194 = por %p192, %p193
    %p196 = scmp.ne.s32.totalorder %s179, %s195
    %p197 = scmp.eq.s32.totalorder %s19, 0
    %p198 = por %p196, %p197
    %p199 = scmp.le.s32.totalorder 1, %s13
    %p200 = scmp.lt.s32.totalorder %s13, 5
    %p201 = pnand %p199, %p200
    %p202 = pneg %p201
    // Predicated region
    $region9: #{tpu_custom_call.1} parent=5 // pred_check
      _
    $region10: #{tpu_custom_call.1} parent=5 // pred_check_branch
      %204 = sbr.rel (%p201) target = $region12
    $region11: #{tpu_custom_call.1} parent=5 // pred_region
      %s205 = ssub.s32 %s13, 1
      // Predicated region
      $region13: #{tpu_custom_call.1} parent=11 // pred_check
        %p206 = pneg %p60
      $region14: #{tpu_custom_call.1} parent=11 // pred_check_branch
        %208 = sbr.rel (%p206) target = $region16
      $region15: #{tpu_custom_call.1} parent=11 // pred_region
        _
      $region16: #{tpu_custom_call.1} parent=11 // pred_fallthru
        _
      // Predicated region
      $region17: #{tpu_custom_call.1} parent=11 // pred_check
        %p209 = pneg %p81
      $region18: #{tpu_custom_call.1} parent=11 // pred_check_branch
        %211 = sbr.rel (%p209) target = $region20
      $region19: #{tpu_custom_call.1} parent=11 // pred_region
        _
      $region20: #{tpu_custom_call.1} parent=11 // pred_fallthru
        _
      // Predicated region
      $region21: #{tpu_custom_call.1} parent=11 // pred_check
        %p212 = pneg %p102
      $region22: #{tpu_custom_call.1} parent=11 // pred_check_branch
        %214 = sbr.rel (%p212) target = $region24
      $region23: #{tpu_custom_call.1} parent=11 // pred_region
        _
      $region24: #{tpu_custom_call.1} parent=11 // pred_fallthru
        _
      // Predicated region
      $region25: #{tpu_custom_call.1} parent=11 // pred_check
        %p215 = pneg %p123
      $region26: #{tpu_custom_call.1} parent=11 // pred_check_branch
        %217 = sbr.rel (%p215) target = $region28
      $region27: #{tpu_custom_call.1} parent=11 // pred_region
        _
      $region28: #{tpu_custom_call.1} parent=11 // pred_fallthru
        _
      // Predicated region
      $region29: #{tpu_custom_call.1} parent=11 // pred_check
        %p218 = pneg %p144
      $region30: #{tpu_custom_call.1} parent=11 // pred_check_branch
        %220 = sbr.rel (%p218) target = $region32
      $region31: #{tpu_custom_call.1} parent=11 // pred_region
        _
      $region32: #{tpu_custom_call.1} parent=11 // pred_fallthru
        _
      // Predicated region
      $region33: #{tpu_custom_call.1} parent=11 // pred_check
        %p221 = pneg %p165
      $region34: #{tpu_custom_call.1} parent=11 // pred_check_branch
        %223 = sbr.rel (%p221) target = $region36
      $region35: #{tpu_custom_call.1} parent=11 // pred_region
        _
      $region36: #{tpu_custom_call.1} parent=11 // pred_fallthru
        _
    $region12: #{tpu_custom_call.1} parent=5 // pred_fallthru
      _
    %p224 = scmp.lt.s32.totalorder %s13, 4
    // Predicated region
    $region37: #{tpu_custom_call.1} parent=5 // pred_check
      %p225 = pneg %p224
    $region38: #{tpu_custom_call.1} parent=5 // pred_check_branch
      %227 = sbr.rel (%p225) target = $region40
    $region39: #{tpu_custom_call.1} parent=5 // pred_region
      // Predicated region
      $region41: #{tpu_custom_call.1} parent=39 // pred_check
        %p228 = pneg %p33
      $region42: #{tpu_custom_call.1} parent=39 // pred_check_branch
        %230 = sbr.rel (%p228) target = $region44
      $region43: #{tpu_custom_call.1} parent=39 // pred_region
        %p231 = scmp.lt.s32.totalorder %s13, 3
        %s232 = scalar_select %p231, %s13, 3
        %s233 = smul.addr %s232, 4
        %s234 = smul.addr %s233, 8
        %s235 = scalar_lea.vmem %s0, %s234
      $region44: #{tpu_custom_call.1} parent=39 // pred_fallthru
        _
    $region40: #{tpu_custom_call.1} parent=5 // pred_fallthru
      _
    %p236 = scmp.le.s32.totalorder 1, %s13
    %p237 = scmp.lt.s32.totalorder %s13, 5
    %p238 = pnand %p236, %p237
    %p239 = pneg %p238
    // Predicated region
    $region45: #{tpu_custom_call.1} parent=5 // pred_check
      _
    $region46: #{tpu_custom_call.1} parent=5 // pred_check_branch
      %241 = sbr.rel (%p238) target = $region48
    $region47: #{tpu_custom_call.1} parent=5 // pred_region
      %s242 = ssub.s32 %s13, 1
      %p243 = scmp.lt.s32.totalorder %s18, 3
      %s244 = scalar_select %p243, %s18, 3
      %s245 = smul.addr %s244, 4
      %s246 = smul.addr %s245, 8
      %s247 = scalar_lea.vmem %s0, %s246
      %p248 = pneg %p39
      %p249 = pneg %p36
      %p250 = pneg %p60
      %p251 = pneg %p57
      %p252 = pneg %p81
      %p253 = pneg %p78
      %p254 = pneg %p102
      %p255 = pneg %p99
      %p256 = pneg %p123
      %p257 = pneg %p120
      %p258 = pneg %p144
      %p259 = pneg %p141
      %p260 = pneg %p165
      %p261 = pneg %p162
      %p262 = pneg %p191
      %p263 = pneg %p188
      %p264 = scmp.lt.s32.totalorder %s18, 3
      %s265 = scalar_select %p264, %s18, 3
      %s266 = smul.addr %s265, 4
      %s267 = smul.addr %s266, 8
      %s268 = scalar_lea.vmem %s7, %s267
      %p269 = scmp.lt.s32.totalorder %s18, 3
      %s270 = scalar_select %p269, %s18, 3
      %s271 = smul.addr %s270, 4
      %s272 = smul.addr %s271, 8
      %s273 = scalar_lea.vmem %s0, %s272
      %p274 = scmp.lt.s32.totalorder %s18, 3
      %s275 = scalar_select %p274, %s18, 3
      %s276 = smul.addr %s275, 4
      %s277 = smul.addr %s276, 8
      %s278 = scalar_lea.vmem %s7, %s277
      %v279 = vld [vmem:[%s273] sm:$0xff]
      %v280 = vld [vmem:[%s273 + $0x8] sm:$0xff]
      %v281 = vld [vmem:[%s273 + $0x10] sm:$0xff]
      %v282 = vld [vmem:[%s273 + $0x18] sm:$0xff]
      %v283 = vld [vmem:[%s2] sm:$0x7]
      %v284 = vld [vmem:[%s1] sm:$0xff]
      %v285 = vld [vmem:[%s1 + $0x8] sm:$0xff]
      %v286 = vlaneseq
      %v287 = vshrl.u32 %v286, 7
      %v288 = vsub.s32 0, %v287
      %v289 = vrot.slane %v283, %v288
      %vm290 = vcmask 130048
      %v292 = vsel %vm290, %v279, 0
      %v295 = vsel %vm290, %v280, 0
      %v298 = vsel %vm290, %v281, 0
      %v301 = vsel %vm290, %v282, 0
      %303 = vmatprep.subr.mxu0 0.0
      %304 = vmatpush1.msra.mxu0 %v284
      %305 = vmatprep.subr.mxu0 0.0
      %306 = vmatpush1.msra.mxu0 %v285
      %307 = vmatprep.subr.mxu0 0.0
      %308 = vmatpush1.msra.mxu0 0.0
      %309 = vmatprep.subr.mxu0 0.0
      %310 = vmatpush1.msra.mxu0 0.0
      %311 = vmatprep.subr.mxu0 0.0
      %312 = vmatpush1.msra.mxu0 0.0
      %313 = vmatprep.subr.mxu0 0.0
      %314 = vmatpush1.msra.mxu0 0.0
      %315 = vmatprep.subr.mxu0 0.0
      %316 = vmatpush1.msra.mxu0 0.0
      %317 = vmatprep.subr.mxu0 0.0
      %318 = vmatpush1.msra.mxu0 0.0
      %319 = vmatprep.subr.mxu0 0.0
      %320 = vmatpush1.msra.mxu0 0.0
      %321 = vmatprep.subr.mxu0 0.0
      %322 = vmatpush1.msra.mxu0 0.0
      %323 = vmatprep.subr.mxu0 0.0
      %324 = vmatpush1.msra.mxu0 0.0
      %325 = vmatprep.subr.mxu0 0.0
      %326 = vmatpush1.msra.mxu0 0.0
      %327 = vmatprep.subr.mxu0 0.0
      %328 = vmatpush1.msra.mxu0 0.0
      %329 = vmatprep.subr.mxu0 0.0
      %330 = vmatpush1.msra.mxu0 0.0
      %331 = vmatprep.subr.mxu0 0.0
      %332 = vmatpush1.msra.mxu0 0.0
      %333 = vmatprep.subr.mxu0 0.0
      %334 = vmatpush1.msra.mxu0 0.0
      %335 = vmatprep.subr.mxu0 0.0
      %336 = vmatpush1.msra.mxu0 0.0
      %337 = vmatprep.subr.mxu0 0.0
      %338 = vmatpush1.msra.mxu0 0.0
      %339 = vmatprep.subr.mxu0 0.0
      %340 = vmatpush1.msra.mxu0 0.0
      %341 = vmatprep.subr.mxu0 0.0
      %342 = vmatpush1.msra.mxu0 0.0
      %343 = vmatprep.subr.mxu0 0.0
      %344 = vmatpush1.msra.mxu0 0.0
      %345 = vmatprep.subr.mxu0 0.0
      %346 = vmatpush1.msra.mxu0 0.0
      %347 = vmatprep.subr.mxu0 0.0
      %348 = vmatpush1.msra.mxu0 0.0
      %349 = vmatprep.subr.mxu0 0.0
      %350 = vmatpush1.msra.mxu0 0.0
      %351 = vmatprep.subr.mxu0 0.0
      %352 = vmatpush1.msra.mxu0 0.0
      %353 = vmatprep.subr.mxu0 0.0
      %354 = vmatpush1.msra.mxu0 0.0
      %355 = vmatprep.subr.mxu0 0.0
      %356 = vmatpush1.msra.mxu0 0.0
      %357 = vmatprep.subr.mxu0 0.0
      %358 = vmatpush1.msra.mxu0 0.0
      %359 = vmatprep.subr.mxu0 0.0
      %360 = vmatpush1.msra.mxu0 0.0
      %361 = vmatprep.subr.mxu0 0.0
      %362 = vmatpush1.msra.mxu0 0.0
      %363 = vmatprep.subr.mxu0 0.0
      %364 = vmatpush1.msra.mxu0 0.0
      %365 = vmatprep.subr.mxu0 0.0
      %366 = vmatpush1.msra.mxu0 0.0
      %367 = vmatprep.mubr.f32.mxu0 0.0
      %368 = vmatmul.mubr.f32.gmra.mrb[0].mxu0 %v292
      %v369 = vpop.f32.mrb[0].mxu0
      %v370 = vadd.f32 %v289, %v369
      %v371 = vpop.f32.mrb[0].mxu0
      %372 = vmatprep.mubr.f32.mxu0 0.0
      %373 = vmatmul.mubr.f32.gmra.mrb[0].mxu0 %v295
      %v374 = vpop.f32.mrb[0].mxu0
      %v375 = vadd.f32 %v289, %v374
      %v376 = vpop.f32.mrb[0].mxu0
      %377 = vmatprep.mubr.f32.mxu0 0.0
      %378 = vmatmul.mubr.f32.gmra.mrb[0].mxu0 %v298
      %v379 = vpop.f32.mrb[0].mxu0
      %v380 = vadd.f32 %v289, %v379
      %v381 = vpop.f32.mrb[0].mxu0
      %382 = vmatprep.mubr.f32.mxu0 0.0
      %383 = vmatmul.mubr.f32.gmra.mrb[0].mxu0 %v301
      %v384 = vpop.f32.mrb[0].mxu0
      %v385 = vadd.f32 %v289, %v384
      %v386 = vpop.f32.mrb[0].mxu0
      %387 = vdwg.mxu0
      %vm388 = vcmask 261120
      %v389 = vsel %vm388, %v370, 0.0
      %v390 = vsel %vm388, %v375, 0.0
      %v391 = vadd.f32 %v389, %v390
      %v392 = vsel %vm388, %v380, 0.0
      %v393 = vadd.f32 %v391, %v392
      %v394 = vsel %vm388, %v385, 0.0
      %v395 = vadd.f32 %v393, %v394
      %v396 = vrot.slane %v395, 4
      %v397 = vadd.f32 %v395, %v396
      %v398 = vrot.slane %v397, 2
      %v399 = vadd.f32 %v397, %v398
      %v400 = vrot.slane %v399, 1
      %v401 = vadd.f32 %v399, %v400
      %v402 = vmul.f32 %v370, %v370
      %v403 = vmul.f32 %v375, %v375
      %v404 = vmul.f32 %v380, %v380
      %v405 = vmul.f32 %v385, %v385
      %v406 = vsel %vm388, %v402, 0.0
      %v407 = vsel %vm388, %v403, 0.0
      %v408 = vadd.f32 %v406, %v407
      %v409 = vsel %vm388, %v404, 0.0
      %v410 = vadd.f32 %v408, %v409
      %v411 = vsel %vm388, %v405, 0.0
      %v412 = vadd.f32 %v410, %v411
      %v413 = vrot.slane %v412, 4
      %v414 = vadd.f32 %v412, %v413
      %v415 = vrot.slane %v414, 2
      %v416 = vadd.f32 %v414, %v415
      %v417 = vrot.slane %v416, 1
      %v418 = vadd.f32 %v416, %v417
      %v419 = vmul.f32 %v401, 0.03125
      %v420 = vmul.f32 %v418, 0.03125
      %v421 = vmul.f32 %v419, %v419
      %v422 = vsub.f32 %v420, %v421
      %v423 = vmax.f32 %v422, 0.0
      %v424 = vsub.f32 %v370, %v419
      %v425 = vsub.f32 %v375, %v419
      %v426 = vsub.f32 %v380, %v419
      %v427 = vsub.f32 %v385, %v419
      %v428 = vadd.f32 %v423, 1e-05
      %v429 = vrsqrt.pop %v428
      %v430 = vmul.f32 %v424, %v429
      %v431 = vmul.f32 %v425, %v429
      %v432 = vmul.f32 %v426, %v429
      %v433 = vmul.f32 %v427, %v429
      %v434 = vlaneseq
      %v435 = vshrl.u32 %v434, 7
      %v436 = vsub.s32 1, %v435
      %v437 = vrot.slane %v283, %v436
      %v438 = vmul.f32 %v430, %v437
      %v439 = vmul.f32 %v431, %v437
      %v440 = vmul.f32 %v432, %v437
      %v441 = vmul.f32 %v433, %v437
      %v442 = vlaneseq
      %v443 = vshrl.u32 %v442, 7
      %v444 = vsub.s32 2, %v443
      %v445 = vrot.slane %v283, %v444
      %v446 = vadd.f32 %v438, %v445
      %v447 = vadd.f32 %v439, %v445
      %v448 = vadd.f32 %v440, %v445
      %v449 = vadd.f32 %v441, %v445
      %v450 = vmax.f32 %v446, 0.0
      %v451 = vmax.f32 %v447, 0.0
      %v452 = vmax.f32 %v448, 0.0
      %v453 = vmax.f32 %v449, 0.0
      %v454 = vld [vmem:[%s4] sm:$0x7]
      %v455 = vld [vmem:[%s3] sm:$0xff]
      %v456 = vld [vmem:[%s3 + $0x8] sm:$0xff]
      %v457 = vld [vmem:[%s3 + $0x10] sm:$0xff]
      %v458 = vld [vmem:[%s3 + $0x18] sm:$0xff]
      %v459 = vlaneseq
      %v460 = vshrl.u32 %v459, 7
      %v461 = vsub.s32 0, %v460
      %v462 = vrot.slane %v454, %v461
      %v464 = vsel %vm388, %v450, 0
      %v467 = vsel %vm388, %v451, 0
      %v470 = vsel %vm388, %v452, 0
      %v473 = vsel %vm388, %v453, 0
      %475 = vmatprep.subr.mxu0 0.0
      %476 = vmatpush1.msra.mxu0 %v455
      %477 = vmatprep.subr.mxu0 0.0
      %478 = vmatpush1.msra.mxu0 %v456
      %479 = vmatprep.subr.mxu0 0.0
      %480 = vmatpush1.msra.mxu0 %v457
      %481 = vmatprep.subr.mxu0 0.0
      %482 = vmatpush1.msra.mxu0 %v458
      %483 = vmatprep.subr.mxu0 0.0
      %484 = vmatpush1.msra.mxu0 0.0
      %485 = vmatprep.subr.mxu0 0.0
      %486 = vmatpush1.msra.mxu0 0.0
      %487 = vmatprep.subr.mxu0 0.0
      %488 = vmatpush1.msra.mxu0 0.0
      %489 = vmatprep.subr.mxu0 0.0
      %490 = vmatpush1.msra.mxu0 0.0
      %491 = vmatprep.subr.mxu0 0.0
      %492 = vmatpush1.msra.mxu0 0.0
      %493 = vmatprep.subr.mxu0 0.0
      %494 = vmatpush1.msra.mxu0 0.0
      %495 = vmatprep.subr.mxu0 0.0
      %496 = vmatpush1.msra.mxu0 0.0
      %497 = vmatprep.subr.mxu0 0.0
      %498 = vmatpush1.msra.mxu0 0.0
      %499 = vmatprep.subr.mxu0 0.0
      %500 = vmatpush1.msra.mxu0 0.0
      %501 = vmatprep.subr.mxu0 0.0
      %502 = vmatpush1.msra.mxu0 0.0
      %503 = vmatprep.subr.mxu0 0.0
      %504 = vmatpush1.msra.mxu0 0.0
      %505 = vmatprep.subr.mxu0 0.0
      %506 = vmatpush1.msra.mxu0 0.0
      %507 = vmatprep.subr.mxu0 0.0
      %508 = vmatpush1.msra.mxu0 0.0
      %509 = vmatprep.subr.mxu0 0.0
      %510 = vmatpush1.msra.mxu0 0.0
      %511 = vmatprep.subr.mxu0 0.0
      %512 = vmatpush1.msra.mxu0 0.0
      %513 = vmatprep.subr.mxu0 0.0
      %514 = vmatpush1.msra.mxu0 0.0
      %515 = vmatprep.subr.mxu0 0.0
      %516 = vmatpush1.msra.mxu0 0.0
      %517 = vmatprep.subr.mxu0 0.0
      %518 = vmatpush1.msra.mxu0 0.0
      %519 = vmatprep.subr.mxu0 0.0
      %520 = vmatpush1.msra.mxu0 0.0
      %521 = vmatprep.subr.mxu0 0.0
      %522 = vmatpush1.msra.mxu0 0.0
      %523 = vmatprep.subr.mxu0 0.0
      %524 = vmatpush1.msra.mxu0 0.0
      %525 = vmatprep.subr.mxu0 0.0
      %526 = vmatpush1.msra.mxu0 0.0
      %527 = vmatprep.subr.mxu0 0.0
      %528 = vmatpush1.msra.mxu0 0.0
      %529 = vmatprep.subr.mxu0 0.0
      %530 = vmatpush1.msra.mxu0 0.0
      %531 = vmatprep.subr.mxu0 0.0
      %532 = vmatpush1.msra.mxu0 0.0
      %533 = vmatprep.subr.mxu0 0.0
      %534 = vmatpush1.msra.mxu0 0.0
      %535 = vmatprep.subr.mxu0 0.0
      %536 = vmatpush1.msra.mxu0 0.0
      %537 = vmatprep.subr.mxu0 0.0
      %538 = vmatpush1.msra.mxu0 0.0
      %539 = vmatprep.mubr.f32.mxu0 0.0
      %540 = vmatmul.mubr.f32.gmra.mrb[0].mxu0 %v464
      %v541 = vpop.f32.mrb[0].mxu0
      %v542 = vadd.f32 %v462, %v541
      %v543 = vpop.f32.mrb[0].mxu0
      %544 = vmatprep.mubr.f32.mxu0 0.0
      %545 = vmatmul.mubr.f32.gmra.mrb[0].mxu0 %v467
      %v546 = vpop.f32.mrb[0].mxu0
      %v547 = vadd.f32 %v462, %v546
      %v548 = vpop.f32.mrb[0].mxu0
      %549 = vmatprep.mubr.f32.mxu0 0.0
      %550 = vmatmul.mubr.f32.gmra.mrb[0].mxu0 %v470
      %v551 = vpop.f32.mrb[0].mxu0
      %v552 = vadd.f32 %v462, %v551
      %v553 = vpop.f32.mrb[0].mxu0
      %554 = vmatprep.mubr.f32.mxu0 0.0
      %555 = vmatmul.mubr.f32.gmra.mrb[0].mxu0 %v473
      %v556 = vpop.f32.mrb[0].mxu0
      %v557 = vadd.f32 %v462, %v556
      %v558 = vpop.f32.mrb[0].mxu0
      %559 = vdwg.mxu0
      %v560 = vsel %vm388, %v542, 0.0
      %v561 = vsel %vm388, %v547, 0.0
      %v562 = vadd.f32 %v560, %v561
      %v563 = vsel %vm388, %v552, 0.0
      %v564 = vadd.f32 %v562, %v563
      %v565 = vsel %vm388, %v557, 0.0
      %v566 = vadd.f32 %v564, %v565
      %v567 = vrot.slane %v566, 4
      %v568 = vadd.f32 %v566, %v567
      %v569 = vrot.slane %v568, 2
      %v570 = vadd.f32 %v568, %v569
      %v571 = vrot.slane %v570, 1
      %v572 = vadd.f32 %v570, %v571
      %v573 = vmul.f32 %v542, %v542
      %v574 = vmul.f32 %v547, %v547
      %v575 = vmul.f32 %v552, %v552
      %v576 = vmul.f32 %v557, %v557
      %v577 = vsel %vm388, %v573, 0.0
      %v578 = vsel %vm388, %v574, 0.0
      %v579 = vadd.f32 %v577, %v578
      %v580 = vsel %vm388, %v575, 0.0
      %v581 = vadd.f32 %v579, %v580
      %v582 = vsel %vm388, %v576, 0.0
      %v583 = vadd.f32 %v581, %v582
      %v584 = vrot.slane %v583, 4
      %v585 = vadd.f32 %v583, %v584
      %v586 = vrot.slane %v585, 2
      %v587 = vadd.f32 %v585, %v586
      %v588 = vrot.slane %v587, 1
      %v589 = vadd.f32 %v587, %v588
      %v590 = vmul.f32 %v572, 0.03125
      %v591 = vmul.f32 %v589, 0.03125
      %v592 = vmul.f32 %v590, %v590
      %v593 = vsub.f32 %v591, %v592
      %v594 = vmax.f32 %v593, 0.0
      %v595 = vsub.f32 %v542, %v590
      %v596 = vsub.f32 %v547, %v590
      %v597 = vsub.f32 %v552, %v590
      %v598 = vsub.f32 %v557, %v590
      %v599 = vadd.f32 %v594, 1e-05
      %v600 = vrsqrt.pop %v599
      %v601 = vmul.f32 %v595, %v600
      %v602 = vmul.f32 %v596, %v600
      %v603 = vmul.f32 %v597, %v600
      %v604 = vmul.f32 %v598, %v600
      %v605 = vlaneseq
      %v606 = vshrl.u32 %v605, 7
      %v607 = vsub.s32 1, %v606
      %v608 = vrot.slane %v454, %v607
      %v609 = vmul.f32 %v601, %v608
      %v610 = vmul.f32 %v602, %v608
      %v611 = vmul.f32 %v603, %v608
      %v612 = vmul.f32 %v604, %v608
      %v613 = vlaneseq
      %v614 = vshrl.u32 %v613, 7
      %v615 = vsub.s32 2, %v614
      %v616 = vrot.slane %v454, %v615
      %v617 = vadd.f32 %v609, %v616
      %v618 = vadd.f32 %v610, %v616
      %v619 = vadd.f32 %v611, %v616
      %v620 = vadd.f32 %v612, %v616
      %v621 = vmax.f32 %v617, 0.0
      %v622 = vmax.f32 %v618, 0.0
      %v623 = vmax.f32 %v619, 0.0
      %v624 = vmax.f32 %v620, 0.0
      %v625 = vld [vmem:[%s5] sm:$0xff]
      %v626 = vld [vmem:[%s5 + $0x8] sm:$0xff]
      %v627 = vld [vmem:[%s5 + $0x10] sm:$0xff]
      %v628 = vld [vmem:[%s5 + $0x18] sm:$0xff]
      %v629 = vld [vmem:[%s6] sm:$0x1]
      %v631 = vlaneseq
      %v632 = vshrl.u32 %v631, 7
      %v633 = vsub.s32 0, %v632
      %v634 = vrot.slane %v629, %v633
      %v637 = vsel %vm388, %v621, 0
      %v640 = vsel %vm388, %v622, 0
      %v643 = vsel %vm388, %v623, 0
      %v646 = vsel %vm388, %v624, 0
      %648 = vmatprep.subr.mxu0 0.0
      %649 = vmatpush1.msra.mxu0 %v625
      %650 = vmatprep.subr.mxu0 0.0
      %651 = vmatpush1.msra.mxu0 %v626
      %652 = vmatprep.subr.mxu0 0.0
      %653 = vmatpush1.msra.mxu0 %v627
      %654 = vmatprep.subr.mxu0 0.0
      %655 = vmatpush1.msra.mxu0 %v628
      %656 = vmatprep.subr.mxu0 0.0
      %657 = vmatpush1.msra.mxu0 0.0
      %658 = vmatprep.subr.mxu0 0.0
      %659 = vmatpush1.msra.mxu0 0.0
      %660 = vmatprep.subr.mxu0 0.0
      %661 = vmatpush1.msra.mxu0 0.0
      %662 = vmatprep.subr.mxu0 0.0
      %663 = vmatpush1.msra.mxu0 0.0
      %664 = vmatprep.subr.mxu0 0.0
      %665 = vmatpush1.msra.mxu0 0.0
      %666 = vmatprep.subr.mxu0 0.0
      %667 = vmatpush1.msra.mxu0 0.0
      %668 = vmatprep.subr.mxu0 0.0
      %669 = vmatpush1.msra.mxu0 0.0
      %670 = vmatprep.subr.mxu0 0.0
      %671 = vmatpush1.msra.mxu0 0.0
      %672 = vmatprep.subr.mxu0 0.0
      %673 = vmatpush1.msra.mxu0 0.0
      %674 = vmatprep.subr.mxu0 0.0
      %675 = vmatpush1.msra.mxu0 0.0
      %676 = vmatprep.subr.mxu0 0.0
      %677 = vmatpush1.msra.mxu0 0.0
      %678 = vmatprep.subr.mxu0 0.0
      %679 = vmatpush1.msra.mxu0 0.0
      %680 = vmatprep.subr.mxu0 0.0
      %681 = vmatpush1.msra.mxu0 0.0
      %682 = vmatprep.subr.mxu0 0.0
      %683 = vmatpush1.msra.mxu0 0.0
      %684 = vmatprep.subr.mxu0 0.0
      %685 = vmatpush1.msra.mxu0 0.0
      %686 = vmatprep.subr.mxu0 0.0
      %687 = vmatpush1.msra.mxu0 0.0
      %688 = vmatprep.subr.mxu0 0.0
      %689 = vmatpush1.msra.mxu0 0.0
      %690 = vmatprep.subr.mxu0 0.0
      %691 = vmatpush1.msra.mxu0 0.0
      %692 = vmatprep.subr.mxu0 0.0
      %693 = vmatpush1.msra.mxu0 0.0
      %694 = vmatprep.subr.mxu0 0.0
      %695 = vmatpush1.msra.mxu0 0.0
      %696 = vmatprep.subr.mxu0 0.0
      %697 = vmatpush1.msra.mxu0 0.0
      %698 = vmatprep.subr.mxu0 0.0
      %699 = vmatpush1.msra.mxu0 0.0
      %700 = vmatprep.subr.mxu0 0.0
      %701 = vmatpush1.msra.mxu0 0.0
      %702 = vmatprep.subr.mxu0 0.0
      %703 = vmatpush1.msra.mxu0 0.0
      %704 = vmatprep.subr.mxu0 0.0
      %705 = vmatpush1.msra.mxu0 0.0
      %706 = vmatprep.subr.mxu0 0.0
      %707 = vmatpush1.msra.mxu0 0.0
      %708 = vmatprep.subr.mxu0 0.0
      %709 = vmatpush1.msra.mxu0 0.0
      %710 = vmatprep.subr.mxu0 0.0
      %711 = vmatpush1.msra.mxu0 0.0
      %712 = vmatprep.mubr.f32.mxu0 0.0
      %713 = vmatmul.mubr.f32.gmra.mrb[0].mxu0 %v637
      %v714 = vpop.f32.mrb[0].mxu0
      %v715 = vadd.f32 %v634, %v714
      %v716 = vpop.f32.mrb[0].mxu0
      %717 = vmatprep.mubr.f32.mxu0 0.0
      %718 = vmatmul.mubr.f32.gmra.mrb[0].mxu0 %v640
      %v719 = vpop.f32.mrb[0].mxu0
      %v720 = vadd.f32 %v634, %v719
      %v721 = vpop.f32.mrb[0].mxu0
      %722 = vmatprep.mubr.f32.mxu0 0.0
      %723 = vmatmul.mubr.f32.gmra.mrb[0].mxu0 %v643
      %v724 = vpop.f32.mrb[0].mxu0
      %v725 = vadd.f32 %v634, %v724
      %v726 = vpop.f32.mrb[0].mxu0
      %727 = vmatprep.mubr.f32.mxu0 0.0
      %728 = vmatmul.mubr.f32.gmra.mrb[0].mxu0 %v646
      %v729 = vpop.f32.mrb[0].mxu0
      %v730 = vadd.f32 %v634, %v729
      %v731 = vpop.f32.mrb[0].mxu0
      %732 = vdwg.mxu0
      %v733 = vxor.u32 %v715, 2147483648
      %v734 = vxor.u32 %v720, 2147483648
      %v735 = vxor.u32 %v725, 2147483648
      %v736 = vxor.u32 %v730, 2147483648
      %v737 = vmul.f32 %v733, 1.442695
      %v738 = vpow.pop %v737
      %v739 = vmul.f32 %v734, 1.442695
      %v740 = vpow.pop %v739
      %v741 = vmul.f32 %v735, 1.442695
      %v742 = vpow.pop %v741
      %v743 = vmul.f32 %v736, 1.442695
      %v744 = vpow.pop %v743
      %v745 = vadd.f32 %v738, 1.0
      %v746 = vadd.f32 %v740, 1.0
      %v747 = vadd.f32 %v742, 1.0
      %v748 = vadd.f32 %v744, 1.0
      %v749 = vrcp.pop %v745
      %v750 = vmul.f32 1.0, %v749
      %v751 = vrcp.pop %v746
      %v752 = vmul.f32 1.0, %v751
      %v753 = vrcp.pop %v747
      %v754 = vmul.f32 1.0, %v753
      %v755 = vrcp.pop %v748
      %v756 = vmul.f32 1.0, %v755
      %757 = vst.msk [vmem:[%s278] sm:$0xff] %vm290, %v750
      %758 = vst.msk [vmem:[%s278 + $0x8] sm:$0xff] %vm290, %v752
      %759 = vst.msk [vmem:[%s278 + $0x10] sm:$0xff] %vm290, %v754
      %760 = vst.msk [vmem:[%s278 + $0x18] sm:$0xff] %vm290, %v756
      %p761 = scmp.lt.s32.totalorder %s18, 3
      %s762 = scalar_select %p761, %s18, 3
      %s763 = smul.addr %s762, 4
      %s764 = smul.addr %s763, 8
      %s765 = scalar_lea.vmem %s7, %s764
      // Predicated region
      $region49: #{tpu_custom_call.1} parent=47 // pred_check
        %p766 = pneg %p188
      $region50: #{tpu_custom_call.1} parent=47 // pred_check_branch
        %768 = sbr.rel (%p766) target = $region52
      $region51: #{tpu_custom_call.1} parent=47 // pred_region
        _
      $region52: #{tpu_custom_call.1} parent=47 // pred_fallthru
        _
    $region48: #{tpu_custom_call.1} parent=5 // pred_fallthru
      _
    %p769 = scmp.le.s32.totalorder 2, %s13
    // Predicated region
    $region53: #{tpu_custom_call.1} parent=5 // pred_check
      %p770 = pneg %p769
    $region54: #{tpu_custom_call.1} parent=5 // pred_check_branch
      %772 = sbr.rel (%p770) target = $region56
    $region55: #{tpu_custom_call.1} parent=5 // pred_region
      %s773 = ssub.s32 %s13, 2
      // Predicated region
      $region57: #{tpu_custom_call.1} parent=55 // pred_check
        %p774 = pneg %p194
      $region58: #{tpu_custom_call.1} parent=55 // pred_check_branch
        %776 = sbr.rel (%p774) target = $region60
      $region59: #{tpu_custom_call.1} parent=55 // pred_region
        %p777 = scmp.lt.s32.totalorder %s19, 3
        %s778 = scalar_select %p777, %s19, 3
        %s779 = smul.addr %s778, 4
        %s780 = smul.addr %s779, 8
        %s781 = scalar_lea.vmem %s7, %s780
      $region60: #{tpu_custom_call.1} parent=55 // pred_fallthru
        _
    $region56: #{tpu_custom_call.1} parent=5 // pred_fallthru
      _
  $region6: #{tpu_custom_call.1} parent=0 // loop_footer
    %s17 = sadd.s32 1, %s13
  $region7: #{tpu_custom_call.1} parent=0 // loop_footer_branch
    %12 = sbr.rel target = $region3
  $region8: #{tpu_custom_call.1} parent=0 // loop_exit
    _

</llo_original>
